<compile_context>
chip_gen: v6e
topology: v6e:2x2x1
jax: 0.10.0
libtpu: 0.0.40
codegen_flags: <defaults>
</compile_context>

<pallas_src>
import jax
import jax.numpy as jnp
from jax.experimental import pallas as pl
from jax.experimental.pallas import tpu as pltpu


def _round_up(x: int, m: int) -> int:
    return ((x + m - 1) // m) * m


def _gather_kernel(idx_ref, tab_ref, out_ref):
    """Gather G table rows into the (G, D) output block with a one-hot matmul."""
    g = idx_ref.shape[0]
    e = tab_ref.shape[0]

    ids = idx_ref[...]                                      # (G, 1) int32
    cols = jax.lax.broadcasted_iota(jnp.int32, (g, e), 1)   # (G, E)
    onehot = (cols == ids).astype(jnp.bfloat16)             # exact 0.0 / 1.0

    # Split the f32 table into three bf16 chunks whose sum reconstructs the
    # full f32 mantissa; three bf16 MXU matmuls make the one-hot gather exact
    # to ~1 ulp without depending on f32-matmul precision settings.
    tab = tab_ref[...].astype(jnp.float32)
    hi = tab.astype(jnp.bfloat16)
    r1 = tab - hi.astype(jnp.float32)
    mid = r1.astype(jnp.bfloat16)
    lo = (r1 - mid.astype(jnp.float32)).astype(jnp.bfloat16)

    acc = jnp.dot(onehot, hi, preferred_element_type=jnp.float32)
    acc = acc + jnp.dot(onehot, mid, preferred_element_type=jnp.float32)
    acc = acc + jnp.dot(onehot, lo, preferred_element_type=jnp.float32)
    out_ref[...] = acc.astype(out_ref.dtype)


def embedding_lookup(table: jax.Array, indices: jax.Array, *,
                     block_rows: int = 512) -> jax.Array:
    """Gather rows of `table` at `indices` (== torch.nn.Embedding forward).

    Out-of-range ids produce all-zero rows (torch would raise); callers that
    want torch-like behaviour should validate / clip indices beforehand.
    """
    n = int(indices.shape[0])
    num_emb, d = table.shape
    dtype = table.dtype
    itemsize = jnp.dtype(dtype).itemsize

    if n == 0:
        return jnp.zeros((0, d), dtype)

    # Pad table rows to a packing-friendly multiple (padding rows never selected).
    e = _round_up(num_emb, 16)
    if e != num_emb:
        table = jnp.pad(table, ((0, e - num_emb), (0, 0)))

    lane = 128
    e_lanes = _round_up(e, lane)

    # Output row-block size G: multiple of 16, capped by n, block_rows, and the
    # size of the in-kernel (G, E) one-hot (keep it <= ~8 MiB).
    g = min(block_rows, _round_up(n, 16), max(16, (8 << 20) // (e_lanes * 4)))
    g = max(16, (g // 16) * 16)
    n_pad = _round_up(n, g)

    idx = indices.astype(jnp.int32).reshape(n, 1)
    if n_pad != n:
        idx = jnp.pad(idx, ((0, n_pad - n), (0, 0)))  # pad ids -> row 0, sliced off

    # Explicit VMEM budget: table + index + output blocks are double-buffered
    # by Pallas; add the one-hot / bf16-chunk intermediates and headroom.
    tab_buf = e * _round_up(d, lane) * itemsize
    idx_buf = g * lane * 4
    out_buf = g * _round_up(d, lane) * itemsize
    scratch = 3 * e * _round_up(d, lane) * 2 + 2 * g * e_lanes * 2
    need = 2 * (tab_buf + idx_buf + out_buf) + scratch + (4 << 20)
    vmem_limit = int(min(64 << 20, max(32 << 20, need)))

    cost = pl.CostEstimate(
        flops=2 * n_pad * e * d * 3,
        transcendentals=0,
        bytes_accessed=int(e * d * itemsize + n_pad * 4 + n_pad * d * itemsize),
    )

    out = pl.pallas_call(
        _gather_kernel,
        out_shape=jax.ShapeDtypeStruct((n_pad, d), dtype),
        grid_spec=pltpu.PrefetchScalarGridSpec(
            num_scalar_prefetch=0,
            grid=(n_pad // g,),
            in_specs=[
                # Per-step (G, 1) index block, streamed through VMEM.
                pl.BlockSpec((g, 1), lambda i: (i, 0)),
                # Whole table as one block, same block every step -> VMEM-resident.
                pl.BlockSpec((e, d), lambda i: (0, 0)),
            ],
            out_specs=pl.BlockSpec((g, d), lambda i: (i, 0)),
        ),
        compiler_params=pltpu.CompilerParams(
            dimension_semantics=("parallel",),
            vmem_limit_bytes=vmem_limit,
        ),
        cost_estimate=cost,
    )(idx, table)
    return out[:n]


class REmbedding:
    """JAX/Pallas port of the PyTorch REmbedding module.

    The PyTorch module holds one nn.Embedding per node type (nty); its forward
    returns {nty: embed[nty](xs[nty])}.  Here all per-type lookups are fused
    into ONE Pallas gather over a concatenated table (a single pallas_call).
    """

    def __init__(self, nty2num: dict, embedding_dim: int, key: jax.Array):
        self.nty2num = dict(nty2num)
        self.embedding_dim = embedding_dim
        self.ntys = sorted(self.nty2num)

        self.embeds = {}
        for i, nty in enumerate(self.ntys):
            k = jax.random.fold_in(key, i)
            # nn.Embedding default init: weight ~ N(0, 1)
            self.embeds[nty] = jax.random.normal(
                k, (self.nty2num[nty], embedding_dim), dtype=jnp.float32)

        # Fused table + per-type row offsets (one pallas_call for all types).
        self.offsets = {}
        off = 0
        for nty in self.ntys:
            self.offsets[nty] = off
            off += self.nty2num[nty]
        self.fused_table = jnp.concatenate(
            [self.embeds[nty] for nty in self.ntys], axis=0)

    def __call__(self, xs: dict) -> dict:
        counts = [int(xs[nty].shape[0]) for nty in self.ntys]
        # Single clip keeps each id inside its own sub-table.  (torch raises
        # on out-of-range ids; documented semantic divergence.)
        fused_idx = jnp.concatenate([
            jnp.clip(xs[nty].astype(jnp.int32), 0, self.nty2num[nty] - 1)
            + self.offsets[nty]
            for nty in self.ntys], axis=0)

        fused_out = embedding_lookup(self.fused_table, fused_idx)

        out = {}
        start = 0
        for nty, c in zip(self.ntys, counts):
            out[nty] = fused_out[start:start + c]
            start += c
        return out


if __name__ == "__main__":
    key = jax.random.PRNGKey(0)

    # Synthetic hetero-graph metadata (stand-in for mp.HeteroGraph.nty2num).
    nty2num = {"user": 16, "item": 24}
    embedding_dim = 32

    model = REmbedding(nty2num, embedding_dim, key)

    # Deterministic int32 id vectors, one per node type (counts deliberately
    # not multiples of 8/16 to exercise padding).
    k_user, k_item = jax.random.split(jax.random.fold_in(key, 100))
    xs = {
        "user": jax.random.randint(k_user, (10,), 0, nty2num["user"], dtype=jnp.int32),
        "item": jax.random.randint(k_item, (7,), 0, nty2num["item"], dtype=jnp.int32),
    }

    out = model(xs)
    out = jax.tree_util.tree_map(jax.block_until_ready, out)

    # Correctness check against plain-JAX gather (== torch.nn.Embedding).
    for nty in nty2num:
        ref = jnp.take(model.embeds[nty], xs[nty], axis=0)
        assert out[nty].shape == (xs[nty].shape[0], embedding_dim)
        assert out[nty].dtype == jnp.float32
        assert jnp.allclose(out[nty], ref, rtol=1e-6, atol=1e-6), \
            f"mismatch for node type {nty}"

    print("KERNEL_OK")
</pallas_src>

<mosaic_0001>
module attributes {stable_mosaic.version = 11 : i64} {
  func.func @_gather_kernel(%arg0: i32, %arg1: memref<32x1xi32, #tpu.memory_space<vmem>>, %arg2: memref<48x32xf32, #tpu.memory_space<vmem>>, %arg3: memref<32x32xf32, #tpu.memory_space<vmem>>) attributes {dimension_semantics = [#tpu.dimension_semantics<parallel>], iteration_bounds = array<i64: 1>, scalar_prefetch = 0 : i64, scratch_operands = 0 : i64, tpu.core_type = #tpu.core_type<tc>, window_params = [{transform_indices = @transform_0, window_bounds = array<i64: 32, 1>}, {pipeline_mode = #tpu.pipeline_mode<synchronous>, transform_indices = @transform_1, window_bounds = array<i64: 48, 32>}, {transform_indices = @transform_2, window_bounds = array<i64: 32, 32>}]} {
    %c0 = arith.constant 0 : index
    %c0_0 = arith.constant 0 : index
    %0 = vector.load %arg1[%c0, %c0_0] : memref<32x1xi32, #tpu.memory_space<vmem>>, vector<32x1xi32>
    %1 = tpu.iota {dimensions = array<i32: 1>} : vector<32x48xi32>
    %2 = vector.broadcast %0 : vector<32x1xi32> to vector<32x48xi32>
    %3 = arith.cmpi eq, %1, %2 : vector<32x48xi32>
    %4 = arith.extui %3 : vector<32x48xi1> to vector<32x48xi32>
    %5 = arith.sitofp %4 : vector<32x48xi32> to vector<32x48xf32>
    %6 = arith.truncf %5 : vector<32x48xf32> to vector<32x48xbf16>
    %c0_1 = arith.constant 0 : index
    %c0_2 = arith.constant 0 : index
    %7 = vector.load %arg2[%c0_1, %c0_2] : memref<48x32xf32, #tpu.memory_space<vmem>>, vector<48x32xf32>
    %8 = arith.truncf %7 : vector<48x32xf32> to vector<48x32xbf16>
    %9 = arith.extf %8 : vector<48x32xbf16> to vector<48x32xf32>
    %10 = arith.subf %7, %9 : vector<48x32xf32>
    %11 = arith.truncf %10 : vector<48x32xf32> to vector<48x32xbf16>
    %12 = arith.extf %11 : vector<48x32xbf16> to vector<48x32xf32>
    %13 = arith.subf %10, %12 : vector<48x32xf32>
    %14 = arith.truncf %13 : vector<48x32xf32> to vector<48x32xbf16>
    %cst = arith.constant dense<0.000000e+00> : vector<32x32xf32>
    %15 = tpu.matmul %6, %8, %cst {dimension_numbers = #tpu.dot_dimension_numbers<[1], [0], [0], [1], [0, 0, 1, 1], [], []>} : vector<32x48xbf16>, vector<48x32xbf16>, vector<32x32xf32> -> vector<32x32xf32>
    %cst_3 = arith.constant dense<0.000000e+00> : vector<32x32xf32>
    %16 = tpu.matmul %6, %11, %cst_3 {dimension_numbers = #tpu.dot_dimension_numbers<[1], [0], [0], [1], [0, 0, 1, 1], [], []>} : vector<32x48xbf16>, vector<48x32xbf16>, vector<32x32xf32> -> vector<32x32xf32>
    %17 = arith.addf %15, %16 : vector<32x32xf32>
    %cst_4 = arith.constant dense<0.000000e+00> : vector<32x32xf32>
    %18 = tpu.matmul %6, %14, %cst_4 {dimension_numbers = #tpu.dot_dimension_numbers<[1], [0], [0], [1], [0, 0, 1, 1], [], []>} : vector<32x48xbf16>, vector<48x32xbf16>, vector<32x32xf32> -> vector<32x32xf32>
    %19 = arith.addf %17, %18 : vector<32x32xf32>
    %c0_5 = arith.constant 0 : index
    %c0_6 = arith.constant 0 : index
    %20 = vector.load %arg3[%c0_5, %c0_6] : memref<32x32xf32, #tpu.memory_space<vmem>>, vector<32x32xf32>
    tpu.vector_store %arg3[%c0_5, %c0_6], %19 {strides = array<i32>} : memref<32x32xf32, #tpu.memory_space<vmem>>, vector<32x32xf32>,
    return
  }
  func.func @transform_0(%arg0: i32) -> (i32, i32) {
    %c0_i32 = arith.constant 0 : i32
    %c0_i32_0 = arith.constant 0 : i32
    return %arg0, %c0_i32 : i32, i32
  }
  func.func @transform_1(%arg0: i32) -> (i32, i32) {
    %c0_i32 = arith.constant 0 : i32
    %c0_i32_0 = arith.constant 0 : i32
    %c0_i32_1 = arith.constant 0 : i32
    return %c0_i32, %c0_i32_0 : i32, i32
  }
  func.func @transform_2(%arg0: i32) -> (i32, i32) {
    %c0_i32 = arith.constant 0 : i32
    %c0_i32_0 = arith.constant 0 : i32
    return %arg0, %c0_i32 : i32, i32
  }
}

</mosaic_0001>

<llo_original>
// kernel: tpu_custom_call.1
$region0: #{tpu_custom_call.1}
  #allocation0 [shape = 'u32[]', space=smem, size = 0x4, offset = 0x4, fixed_abs, tag = 'smem constant byte address 0x4 - core index']
  #allocation1 [shape = 'u32[144,128]{1,0:T(1,128)}', space=vmem, size = 0x12000, scoped, tag = 'internal scratch']
  %s0 = inlined_call_operand.vmem [shape: s32[32,1], index: 0, kind: input, shape index: {}]
  %s1 = inlined_call_operand.vmem [shape: f32[48,32], index: 1, kind: input, shape index: {}]
  %s2 = inlined_call_operand.hbm [shape: f32[32,32], index: 2, kind: output, shape index: {}]
  %s3 = sld [smem:[#allocation0]]
  $region18: #{tpu_custom_call.1} parent=0
    _
  %s5 = ssub.s32 1, %s3
  %s6 = scalar_select 0, %s5, %s3
  $region1: #{tpu_custom_call.1} parent=0
    #allocation2 [shape = 'u8[16384]{0}', space=vmem, size = 0x4000, scoped, tag = 'output window, operand 0, single buffered']
    #allocation3 [shape = 's32[1]{0}', space=sflag, size = 0x4, scoped, tag = 'scoped memory for tpu_custom_call.1']
    %7 = vsyncpa [#allocation3], 0
    // Predicated region
    $region2: #{tpu_custom_call.1} parent=1 // pred_check
      _
    $region3: #{tpu_custom_call.1} parent=1 // pred_check_branch
      %9 = sbr.rel (0) target = $region5
    $region4: #{tpu_custom_call.1} parent=1 // pred_region
      _
    $region5: #{tpu_custom_call.1} parent=1 // pred_fallthru
      _
    // Predicated region
    $region6: #{tpu_custom_call.1} parent=1 // pred_check
      _
    $region7: #{tpu_custom_call.1} parent=1 // pred_check_branch
      %11 = sbr.rel (0) target = $region9
    $region8: #{tpu_custom_call.1} parent=1 // pred_region
      _
    $region9: #{tpu_custom_call.1} parent=1 // pred_fallthru
      _
    %v13 = vld [vmem:[%s0] sm:$0xff]
    %v14 = vld [vmem:[%s0 + $0x8] sm:$0xff]
    %v15 = vld [vmem:[%s0 + $0x10] sm:$0xff]
    %v16 = vld [vmem:[%s0 + $0x18] sm:$0xff]
    %v17 = vlaneseq
    %v18 = vand.u32 %v17, 127
    %19 = vset.pattern.permute.xlu0 0
    %20 = vperm.xlu0 %19, %v13
    %v21 = vpop.permute.xlu0 %20
    %22 = vset.pattern.permute.xlu0 0
    %23 = vperm.xlu0 %22, %v14
    %v24 = vpop.permute.xlu0 %23
    %25 = vset.pattern.permute.xlu0 0
    %26 = vperm.xlu0 %25, %v15
    %v27 = vpop.permute.xlu0 %26
    %28 = vset.pattern.permute.xlu0 0
    %29 = vperm.xlu0 %28, %v16
    %v30 = vpop.permute.xlu0 %29
    %vm31 = vcmp.eq.s32.totalorder %v18, %v21
    %vm32 = vcmp.eq.s32.totalorder %v18, %v24
    %vm33 = vcmp.eq.s32.totalorder %v18, %v27
    %vm34 = vcmp.eq.s32.totalorder %v18, %v30
    %v35 = vsel %vm31, 1, 0
    %v36 = vsel %vm32, 1, 0
    %v37 = vsel %vm33, 1, 0
    %v38 = vsel %vm34, 1, 0
    %v39 = vcvt.s32.f32 %v35
    %v40 = vcvt.s32.f32 %v36
    %v41 = vcvt.s32.f32 %v37
    %v42 = vcvt.s32.f32 %v38
    %v43 = vpack.c.bf16 %v40, %v39
    %v44 = vpack.c.bf16 %v42, %v41
    %v45 = vld [vmem:[%s1] sm:$0xff]
    %v46 = vld [vmem:[%s1 + $0x8] sm:$0xff]
    %v47 = vld [vmem:[%s1 + $0x10] sm:$0xff]
    %v48 = vld [vmem:[%s1 + $0x18] sm:$0xff]
    %v49 = vld [vmem:[%s1 + $0x20] sm:$0xff]
    %v50 = vld [vmem:[%s1 + $0x28] sm:$0xff]
    %v51 = vpack.c.bf16 %v46, %v45
    %v52 = vpack.c.bf16 %v48, %v47
    %v53 = vpack.c.bf16 %v50, %v49
    %v54 = vunpack.c.l.bf16 %v51
    %v55 = vunpack.c.h.bf16 %v51
    %v56 = vunpack.c.l.bf16 %v52
    %v57 = vunpack.c.h.bf16 %v52
    %v58 = vunpack.c.l.bf16 %v53
    %v59 = vunpack.c.h.bf16 %v53
    %v60 = vsub.f32 %v45, %v54
    %v61 = vsub.f32 %v46, %v55
    %v62 = vsub.f32 %v47, %v56
    %v63 = vsub.f32 %v48, %v57
    %v64 = vsub.f32 %v49, %v58
    %v65 = vsub.f32 %v50, %v59
    %v66 = vpack.c.bf16 %v61, %v60
    %v67 = vpack.c.bf16 %v63, %v62
    %v68 = vpack.c.bf16 %v65, %v64
    %v69 = vunpack.c.l.bf16 %v66
    %v70 = vunpack.c.h.bf16 %v66
    %v71 = vunpack.c.l.bf16 %v67
    %v72 = vunpack.c.h.bf16 %v67
    %v73 = vunpack.c.l.bf16 %v68
    %v74 = vunpack.c.h.bf16 %v68
    %v75 = vsub.f32 %v60, %v69
    %v76 = vsub.f32 %v61, %v70
    %v77 = vsub.f32 %v62, %v71
    %v78 = vsub.f32 %v63, %v72
    %v79 = vsub.f32 %v64, %v73
    %v80 = vsub.f32 %v65, %v74
    %v81 = vpack.c.bf16 %v76, %v75
    %v82 = vpack.c.bf16 %v78, %v77
    %v83 = vpack.c.bf16 %v80, %v79
    %vm84 = vcmask 392192
    %v86 = vsel %vm84, %v43, 0
    %v89 = vsel %vm84, %v44, 0
    %91 = vmatprep.subr.bf16.mxu0 0
    %92 = vmatpush1.bf16.msra.mxu0 0
    %93 = vmatprep.subr.bf16.mxu0 0
    %94 = vmatpush1.bf16.msra.mxu0 0
    %95 = vmatprep.subr.bf16.mxu0 0
    %96 = vmatpush1.bf16.msra.mxu0 0
    %97 = vmatprep.subr.bf16.mxu0 0
    %98 = vmatpush1.bf16.msra.mxu0 0
    %99 = vmatprep.subr.bf16.mxu0 0
    %100 = vmatpush1.bf16.msra.mxu0 0
    %101 = vmatprep.subr.bf16.mxu0 0
    %102 = vmatpush1.bf16.msra.mxu0 %v68
    %103 = vmatprep.subr.bf16.mxu0 0
    %104 = vmatpush1.bf16.msra.mxu0 %v67
    %105 = vmatprep.subr.bf16.mxu0 0
    %106 = vmatpush1.bf16.msra.mxu0 %v66
    %107 = vmatprep.subr.bf16.mxu0 0
    %108 = vmatpush2.bf16.msra.mxu0 0
    %109 = vmatprep.subr.bf16.mxu0 0
    %110 = vmatpush2.bf16.msra.mxu0 0
    %111 = vmatprep.subr.bf16.mxu0 0
    %112 = vmatpush2.bf16.msra.mxu0 0
    %113 = vmatprep.subr.bf16.mxu0 0
    %114 = vmatpush2.bf16.msra.mxu0 0
    %115 = vmatprep.subr.bf16.mxu0 0
    %116 = vmatpush2.bf16.msra.mxu0 0
    %117 = vmatprep.subr.bf16.mxu0 0
    %118 = vmatpush2.bf16.msra.mxu0 0
    %119 = vmatprep.subr.bf16.mxu0 0
    %120 = vmatpush2.bf16.msra.mxu0 0
    %121 = vmatprep.subr.bf16.mxu0 0
    %122 = vmatpush2.bf16.msra.mxu0 0
    %123 = vmatprep.mubr.bf16.mxu0 0
    %124 = vmatmul.mubr.bf16.gmra.mxu0 %v86
    %v125 = vpop.f32.mrf.mxu0
    %v126 = vadd.f32 0.0, %v125
    %v127 = vpop.f32.mrf.mxu0
    %v128 = vpop.f32.mrf.mxu0
    %v129 = vadd.f32 0.0, %v128
    %v130 = vpop.f32.mrf.mxu0
    %131 = vmatprep.mubr.bf16.mxu0 0
    %132 = vmatmul.mubr.bf16.gmra.mxu0 %v89
    %v133 = vpop.f32.mrf.mxu0
    %v134 = vadd.f32 0.0, %v133
    %v135 = vpop.f32.mrf.mxu0
    %v136 = vpop.f32.mrf.mxu0
    %v137 = vadd.f32 0.0, %v136
    %v138 = vpop.f32.mrf.mxu0
    %139 = vdwg.mxu0
    %140 = vmatprep.subr.bf16.mxu0 0
    %141 = vmatpush1.bf16.msra.mxu0 0
    %142 = vmatprep.subr.bf16.mxu0 0
    %143 = vmatpush1.bf16.msra.mxu0 0
    %144 = vmatprep.subr.bf16.mxu0 0
    %145 = vmatpush1.bf16.msra.mxu0 0
    %146 = vmatprep.subr.bf16.mxu0 0
    %147 = vmatpush1.bf16.msra.mxu0 0
    %148 = vmatprep.subr.bf16.mxu0 0
    %149 = vmatpush1.bf16.msra.mxu0 0
    %150 = vmatprep.subr.bf16.mxu0 0
    %151 = vmatpush1.bf16.msra.mxu0 %v53
    %152 = vmatprep.subr.bf16.mxu0 0
    %153 = vmatpush1.bf16.msra.mxu0 %v52
    %154 = vmatprep.subr.bf16.mxu0 0
    %155 = vmatpush1.bf16.msra.mxu0 %v51
    %156 = vmatprep.subr.bf16.mxu0 0
    %157 = vmatpush2.bf16.msra.mxu0 0
    %158 = vmatprep.subr.bf16.mxu0 0
    %159 = vmatpush2.bf16.msra.mxu0 0
    %160 = vmatprep.subr.bf16.mxu0 0
    %161 = vmatpush2.bf16.msra.mxu0 0
    %162 = vmatprep.subr.bf16.mxu0 0
    %163 = vmatpush2.bf16.msra.mxu0 0
    %164 = vmatprep.subr.bf16.mxu0 0
    %165 = vmatpush2.bf16.msra.mxu0 0
    %166 = vmatprep.subr.bf16.mxu0 0
    %167 = vmatpush2.bf16.msra.mxu0 0
    %168 = vmatprep.subr.bf16.mxu0 0
    %169 = vmatpush2.bf16.msra.mxu0 0
    %170 = vmatprep.subr.bf16.mxu0 0
    %171 = vmatpush2.bf16.msra.mxu0 0
    %172 = vmatprep.mubr.bf16.mxu0 0
    %173 = vmatmul.mubr.bf16.gmra.mxu0 %v86
    %v174 = vpop.f32.mrf.mxu0
    %v175 = vadd.f32 %v126, %v174
    %v176 = vpop.f32.mrf.mxu0
    %v177 = vpop.f32.mrf.mxu0
    %v178 = vadd.f32 %v129, %v177
    %v179 = vpop.f32.mrf.mxu0
    %180 = vmatprep.mubr.bf16.mxu0 0
    %181 = vmatmul.mubr.bf16.gmra.mxu0 %v89
    %v182 = vpop.f32.mrf.mxu0
    %v183 = vadd.f32 %v134, %v182
    %v184 = vpop.f32.mrf.mxu0
    %v185 = vpop.f32.mrf.mxu0
    %v186 = vadd.f32 %v137, %v185
    %v187 = vpop.f32.mrf.mxu0
    %188 = vdwg.mxu0
    %189 = vmatprep.subr.bf16.mxu0 0
    %190 = vmatpush1.bf16.msra.mxu0 0
    %191 = vmatprep.subr.bf16.mxu0 0
    %192 = vmatpush1.bf16.msra.mxu0 0
    %193 = vmatprep.subr.bf16.mxu0 0
    %194 = vmatpush1.bf16.msra.mxu0 0
    %195 = vmatprep.subr.bf16.mxu0 0
    %196 = vmatpush1.bf16.msra.mxu0 0
    %197 = vmatprep.subr.bf16.mxu0 0
    %198 = vmatpush1.bf16.msra.mxu0 0
    %199 = vmatprep.subr.bf16.mxu0 0
    %200 = vmatpush1.bf16.msra.mxu0 %v83
    %201 = vmatprep.subr.bf16.mxu0 0
    %202 = vmatpush1.bf16.msra.mxu0 %v82
    %203 = vmatprep.subr.bf16.mxu0 0
    %204 = vmatpush1.bf16.msra.mxu0 %v81
    %205 = vmatprep.subr.bf16.mxu0 0
    %206 = vmatpush2.bf16.msra.mxu0 0
    %207 = vmatprep.subr.bf16.mxu0 0
    %208 = vmatpush2.bf16.msra.mxu0 0
    %209 = vmatprep.subr.bf16.mxu0 0
    %210 = vmatpush2.bf16.msra.mxu0 0
    %211 = vmatprep.subr.bf16.mxu0 0
    %212 = vmatpush2.bf16.msra.mxu0 0
    %213 = vmatprep.subr.bf16.mxu0 0
    %214 = vmatpush2.bf16.msra.mxu0 0
    %215 = vmatprep.subr.bf16.mxu0 0
    %216 = vmatpush2.bf16.msra.mxu0 0
    %217 = vmatprep.subr.bf16.mxu0 0
    %218 = vmatpush2.bf16.msra.mxu0 0
    %219 = vmatprep.subr.bf16.mxu0 0
    %220 = vmatpush2.bf16.msra.mxu0 0
    %221 = vmatprep.mubr.bf16.mxu0 0
    %222 = vmatmul.mubr.bf16.gmra.mxu0 %v86
    %v223 = vpop.f32.mrf.mxu0
    %v224 = vadd.f32 0.0, %v223
    %v225 = vpop.f32.mrf.mxu0
    %v226 = vpop.f32.mrf.mxu0
    %v227 = vadd.f32 0.0, %v226
    %v228 = vpop.f32.mrf.mxu0
    %229 = vmatprep.mubr.bf16.mxu0 0
    %230 = vmatmul.mubr.bf16.gmra.mxu0 %v89
    %v231 = vpop.f32.mrf.mxu0
    %v232 = vadd.f32 0.0, %v231
    %v233 = vpop.f32.mrf.mxu0
    %v234 = vpop.f32.mrf.mxu0
    %v235 = vadd.f32 0.0, %v234
    %v236 = vpop.f32.mrf.mxu0
    %237 = vdwg.mxu0
    %v238 = vadd.f32 %v175, %v224
    %v239 = vadd.f32 %v178, %v227
    %v240 = vadd.f32 %v183, %v232
    %v241 = vadd.f32 %v186, %v235
    %vm242 = vcmask 261120
    %243 = vst.msk [vmem:[#allocation2] sm:$0xff] %vm242, %v238
    %244 = vst.msk [vmem:[#allocation2 + $0x8] sm:$0xff] %vm242, %v239
    %245 = vst.msk [vmem:[#allocation2 + $0x10] sm:$0xff] %vm242, %v240
    %246 = vst.msk [vmem:[#allocation2 + $0x18] sm:$0xff] %vm242, %v241
    // Predicated region
    $region10: #{tpu_custom_call.1} parent=1 // pred_check
      _
    $region11: #{tpu_custom_call.1} parent=1 // pred_check_branch
      %248 = sbr.rel (0) target = $region13
    $region12: #{tpu_custom_call.1} parent=1 // pred_region
      %s250 = ssub.s32 512, 512
      %251 = vsyncadd [#allocation3], %s250
      %s252 = sshll.u32 [#allocation2], 4
      %s253 = int_to_ptr.vmem [resolvable:$true] %s252
      %258 = dma.vmem_to_hbm [thread:$0]  %s253, 512, %s2, [#allocation3], 128, 128, 8
    $region13: #{tpu_custom_call.1} parent=1 // pred_fallthru
      _
    // Predicated region
    $region14: #{tpu_custom_call.1} parent=1 // pred_check
      _
    $region15: #{tpu_custom_call.1} parent=1 // pred_check_branch
      %260 = sbr.rel (0) target = $region17
    $region16: #{tpu_custom_call.1} parent=1 // pred_region
      %261 = dma.done [#allocation3], 512
    $region17: #{tpu_custom_call.1} parent=1 // pred_fallthru
      _
    %262 = vsyncpa [#allocation3], 1

</llo_original>
